<compile_context>
chip_gen: v5e
topology: v5e:2x2
jax: 0.10.0
libtpu: 0.0.40
codegen_flags: <defaults>
</compile_context>

<pallas_src>
import functools

import numpy as np
import jax
import jax.numpy as jnp
from jax.experimental import pallas as pl
from jax.experimental.pallas import tpu as pltpu


def _round_up(x, m):
    return (x + m - 1) // m * m


def _dense_kernel_f32(x_ref, w_ref, b_ref, o_ref):
    """f32 output path: accumulate straight into the VMEM-resident out block."""
    @pl.when(pl.program_id(2) == 0)
    def _():
        # Initialize the output tile with the broadcast bias; the K loop then
        # accumulates partial products on top.  (Fuses the bias add for free.)
        o_ref[...] = jnp.broadcast_to(b_ref[...], o_ref.shape).astype(o_ref.dtype)

    o_ref[...] += jnp.dot(
        x_ref[...], w_ref[...], preferred_element_type=jnp.float32
    )


def _dense_kernel_acc(x_ref, w_ref, b_ref, o_ref, acc_ref):
    """Narrow output dtype path: f32 VMEM accumulator, cast once at finalize."""
    @pl.when(pl.program_id(2) == 0)
    def _():
        acc_ref[...] = jnp.zeros_like(acc_ref)

    acc_ref[...] += jnp.dot(
        x_ref[...], w_ref[...], preferred_element_type=jnp.float32
    )

    @pl.when(pl.program_id(2) == pl.num_programs(2) - 1)
    def _():
        o_ref[...] = (
            acc_ref[...] + b_ref[...].astype(jnp.float32)
        ).astype(o_ref.dtype)


@functools.partial(jax.jit, static_argnames=("tm", "tn", "tk"))
def dense_pallas(x, W, b, *, tm=512, tn=1024, tk=512):
    """Computes x @ W + b with a tiled Pallas TPU kernel.

    x: (..., in_dim), W: (in_dim, out_dim), b: (out_dim,).
    """
    orig_shape = x.shape
    K = orig_shape[-1]
    x2d = x.reshape(-1, K)
    M = x2d.shape[0]
    Kw, N = W.shape
    assert K == Kw, f"in_dim mismatch: x has {K}, W has {Kw}"

    out_dtype = jnp.promote_types(x.dtype, W.dtype)

    # dtype-aware sublane multiple for the x/out tile (f32: 8, bf16: 16, i8: 32).
    sub = {4: 8, 2: 16, 1: 32}.get(jnp.dtype(x.dtype).itemsize, 8)

    # Clamp tiles to the problem size, keeping lane/sublane alignment.
    tm = max(sub, min(tm, _round_up(M, sub)))
    tn = max(128, min(tn, _round_up(N, 128)))
    tk = max(128, min(tk, _round_up(K, 128)))

    # Only the reduction (K) axis needs zero padding for correctness; M/N edge
    # blocks are handled by Pallas' masked edge reads/writes.  The pad is a
    # no-op whenever K is already a multiple of tk (the common case).
    Kp = _round_up(K, tk)
    xp = jnp.pad(x2d, ((0, 0), (0, Kp - K))) if Kp != K else x2d
    Wp = jnp.pad(W, ((0, Kp - K), (0, 0))) if Kp != K else W
    b2d = b.reshape(1, N)

    grid = (pl.cdiv(M, tm), pl.cdiv(N, tn), Kp // tk)

    if out_dtype == jnp.float32:
        kernel = _dense_kernel_f32
        scratch_shapes = []
    else:
        kernel = _dense_kernel_acc
        scratch_shapes = [pltpu.VMEM((tm, tn), jnp.float32)]

    cost = pl.CostEstimate(
        flops=2 * M * N * Kp,
        transcendentals=0,
        bytes_accessed=(
            xp.size * xp.dtype.itemsize
            + Wp.size * Wp.dtype.itemsize
            + b2d.size * b2d.dtype.itemsize
            + M * N * jnp.dtype(out_dtype).itemsize
        ),
    )

    out = pl.pallas_call(
        kernel,
        out_shape=jax.ShapeDtypeStruct((M, N), out_dtype),
        grid_spec=pltpu.PrefetchScalarGridSpec(
            num_scalar_prefetch=0,
            grid=grid,
            in_specs=[
                pl.BlockSpec((tm, tk), lambda i, j, k: (i, k)),   # x tile
                pl.BlockSpec((tk, tn), lambda i, j, k: (k, j)),   # W tile
                pl.BlockSpec((1, tn), lambda i, j, k: (0, j)),    # bias tile
            ],
            out_specs=pl.BlockSpec((tm, tn), lambda i, j, k: (i, j)),
            scratch_shapes=scratch_shapes,
        ),
        compiler_params=pltpu.CompilerParams(
            dimension_semantics=("parallel", "parallel", "arbitrary"),
        ),
        cost_estimate=cost,
    )(xp, Wp, b2d)

    return out.reshape(*orig_shape[:-1], N)


if __name__ == "__main__":
    # Parameters initialized exactly like the PyTorch module.
    rng = np.random.RandomState(1234)
    in_dim, out_dim = 32, 16
    batch = 8

    W = jnp.asarray(
        rng.uniform(
            low=-np.sqrt(6 / in_dim),
            high=np.sqrt(6 / in_dim),
            size=(in_dim, out_dim),
        ).astype("float32")
    )
    b = jnp.zeros((out_dim,), dtype=jnp.float32)

    # Deterministic small input.
    key = jax.random.PRNGKey(0)
    x = jax.random.normal(key, (batch, in_dim), dtype=jnp.float32)

    y = dense_pallas(x, W, b)
    y = jax.block_until_ready(y)

    # Reference check.
    y_ref = jnp.matmul(x, W) + b
    assert y.shape == (batch, out_dim), f"bad output shape {y.shape}"
    assert jnp.allclose(y, y_ref, rtol=1e-4, atol=1e-4), (
        f"max abs err {jnp.max(jnp.abs(y - y_ref))}"
    )

    print("KERNEL_OK")
</pallas_src>

<mosaic_0001>
module attributes {stable_mosaic.version = 11 : i64} {
  func.func @_dense_kernel_f32(%arg0: i32, %arg1: i32, %arg2: i32, %arg3: memref<8x128xf32, #tpu.memory_space<vmem>>, %arg4: memref<128x128xf32, #tpu.memory_space<vmem>>, %arg5: memref<1x128xf32, #tpu.memory_space<vmem>>, %arg6: memref<8x128xf32, #tpu.memory_space<vmem>>) attributes {dimension_semantics = [#tpu.dimension_semantics<parallel>, #tpu.dimension_semantics<parallel>, #tpu.dimension_semantics<arbitrary>], iteration_bounds = array<i64: 1, 1, 1>, scalar_prefetch = 0 : i64, scratch_operands = 0 : i64, tpu.core_type = #tpu.core_type<tc>, window_params = [{transform_indices = @transform_0, window_bounds = array<i64: 8, 128>}, {transform_indices = @transform_1, window_bounds = array<i64: 128, 128>}, {transform_indices = @transform_2, window_bounds = array<i64: 1, 128>}, {transform_indices = @transform_3, window_bounds = array<i64: 8, 128>}]} {
    %c0_i32 = arith.constant 0 : i32
    %0 = arith.cmpi eq, %arg2, %c0_i32 : i32
    %1 = arith.extui %0 : i1 to i32
    %c0_i32_0 = arith.constant 0 : i32
    %2 = arith.cmpi ne, %1, %c0_i32_0 : i32
    scf.if %2 {
      %c0_8 = arith.constant 0 : index
      %c0_9 = arith.constant 0 : index
      %9 = vector.load %arg5[%c0_8, %c0_9] : memref<1x128xf32, #tpu.memory_space<vmem>>, vector<1x128xf32>
      %10 = vector.shape_cast %9 : vector<1x128xf32> to vector<1x128xf32>
      %11 = vector.broadcast %10 : vector<1x128xf32> to vector<8x128xf32>
      %c0_10 = arith.constant 0 : index
      %c0_11 = arith.constant 0 : index
      %12 = vector.load %arg6[%c0_10, %c0_11] : memref<8x128xf32, #tpu.memory_space<vmem>>, vector<8x128xf32>
      tpu.vector_store %arg6[%c0_10, %c0_11], %11 {strides = array<i32>} : memref<8x128xf32, #tpu.memory_space<vmem>>, vector<8x128xf32>,
    } else {
    }
    %c0 = arith.constant 0 : index
    %c0_1 = arith.constant 0 : index
    %3 = vector.load %arg6[%c0, %c0_1] : memref<8x128xf32, #tpu.memory_space<vmem>>, vector<8x128xf32>
    %c0_2 = arith.constant 0 : index
    %c0_3 = arith.constant 0 : index
    %4 = vector.load %arg3[%c0_2, %c0_3] : memref<8x128xf32, #tpu.memory_space<vmem>>, vector<8x128xf32>
    %c0_4 = arith.constant 0 : index
    %c0_5 = arith.constant 0 : index
    %5 = vector.load %arg4[%c0_4, %c0_5] : memref<128x128xf32, #tpu.memory_space<vmem>>, vector<128x128xf32>
    %cst = arith.constant dense<0.000000e+00> : vector<8x128xf32>
    %6 = tpu.matmul %4, %5, %cst {dimension_numbers = #tpu.dot_dimension_numbers<[1], [0], [0], [1], [0, 0, 1, 1], [], []>} : vector<8x128xf32>, vector<128x128xf32>, vector<8x128xf32> -> vector<8x128xf32>
    %7 = arith.addf %3, %6 : vector<8x128xf32>
    %c0_6 = arith.constant 0 : index
    %c0_7 = arith.constant 0 : index
    %8 = vector.load %arg6[%c0_6, %c0_7] : memref<8x128xf32, #tpu.memory_space<vmem>>, vector<8x128xf32>
    tpu.vector_store %arg6[%c0_6, %c0_7], %7 {strides = array<i32>} : memref<8x128xf32, #tpu.memory_space<vmem>>, vector<8x128xf32>,
    return
  }
  func.func @transform_0(%arg0: i32, %arg1: i32, %arg2: i32) -> (i32, i32) {
    %c0_i32 = arith.constant 0 : i32
    return %arg0, %arg2 : i32, i32
  }
  func.func @transform_1(%arg0: i32, %arg1: i32, %arg2: i32) -> (i32, i32) {
    %c0_i32 = arith.constant 0 : i32
    return %arg2, %arg1 : i32, i32
  }
  func.func @transform_2(%arg0: i32, %arg1: i32, %arg2: i32) -> (i32, i32) {
    %c0_i32 = arith.constant 0 : i32
    %c0_i32_0 = arith.constant 0 : i32
    return %c0_i32, %arg1 : i32, i32
  }
  func.func @transform_3(%arg0: i32, %arg1: i32, %arg2: i32) -> (i32, i32) {
    %c0_i32 = arith.constant 0 : i32
    return %arg0, %arg1 : i32, i32
  }
}

</mosaic_0001>

<llo_original>
// kernel: dense_pallas.1
$region0: #{dense_pallas.1}
  #allocation0 [shape = 'u32[]', space=smem, size = 0x4, offset = 0x4, fixed_abs, tag = 'smem constant byte address 0x4 - core index']
  #allocation1 [shape = 'u32[72,128]{1,0:T(1,128)}', space=vmem, size = 0x9000, scoped, tag = 'internal scratch']
  %s0 = inlined_call_operand.vmem [shape: f32[8,128], index: 0, kind: input, shape index: {}]
  %s1 = inlined_call_operand.vmem [shape: f32[128,16], index: 1, kind: input, shape index: {}]
  %s2 = inlined_call_operand.vmem [shape: f32[1,16], index: 2, kind: input, shape index: {}]
  %s3 = inlined_call_operand.hbm [shape: f32[8,16], index: 3, kind: output, shape index: {}]
  %s4 = sld [smem:[#allocation0]]
  $region26: #{dense_pallas.1} parent=0
    _
  %s6 = ssub.s32 1, %s4
  %s7 = scalar_select 0, %s6, %s4
  $region1: #{dense_pallas.1} parent=0
    #allocation2 [shape = 'u8[4096]{0}', space=vmem, size = 0x1000, scoped, tag = 'output window, operand 0, single buffered']
    #allocation3 [shape = 's32[1]{0}', space=sflag, size = 0x4, scoped, tag = 'scoped memory for dense_pallas.1']
    %8 = vsyncpa [#allocation3], 0
    // Predicated region
    $region2: #{dense_pallas.1} parent=1 // pred_check
      _
    $region3: #{dense_pallas.1} parent=1 // pred_check_branch
      %10 = sbr.rel (0) target = $region5
    $region4: #{dense_pallas.1} parent=1 // pred_region
      _
    $region5: #{dense_pallas.1} parent=1 // pred_fallthru
      _
    // Predicated region
    $region6: #{dense_pallas.1} parent=1 // pred_check
      _
    $region7: #{dense_pallas.1} parent=1 // pred_check_branch
      %12 = sbr.rel (0) target = $region9
    $region8: #{dense_pallas.1} parent=1 // pred_region
      _
    $region9: #{dense_pallas.1} parent=1 // pred_fallthru
      _
    // Predicated region
    $region10: #{dense_pallas.1} parent=1 // pred_check
      _
    $region11: #{dense_pallas.1} parent=1 // pred_check_branch
      %14 = sbr.rel (0) target = $region13
    $region12: #{dense_pallas.1} parent=1 // pred_region
      _
    $region13: #{dense_pallas.1} parent=1 // pred_fallthru
      _
    %p15 = scmp.eq.s32.totalorder 0, 0
    // Predicated region
    $region14: #{dense_pallas.1} parent=1 // pred_check
      %p16 = pneg %p15
    $region15: #{dense_pallas.1} parent=1 // pred_check_branch
      %18 = sbr.rel (%p16) target = $region17
    $region16: #{dense_pallas.1} parent=1 // pred_region
      %v19 = vld [vmem:[%s2] sm:$0x1]
      %v21 = vperm.slane %v19, 0
      %23 = vst [vmem:[#allocation2] sm:$0xff] %v21
    $region17: #{dense_pallas.1} parent=1 // pred_fallthru
      _
    %v24 = vld [vmem:[#allocation2] sm:$0xff]
    %v25 = vld [vmem:[%s0] sm:$0xff]
    %v26 = vld [vmem:[%s1] sm:$0xff]
    %v27 = vld [vmem:[%s1 + $0x8] sm:$0xff]
    %v28 = vld [vmem:[%s1 + $0x10] sm:$0xff]
    %v29 = vld [vmem:[%s1 + $0x18] sm:$0xff]
    %v30 = vld [vmem:[%s1 + $0x20] sm:$0xff]
    %v31 = vld [vmem:[%s1 + $0x28] sm:$0xff]
    %v32 = vld [vmem:[%s1 + $0x30] sm:$0xff]
    %v33 = vld [vmem:[%s1 + $0x38] sm:$0xff]
    %v34 = vld [vmem:[%s1 + $0x40] sm:$0xff]
    %v35 = vld [vmem:[%s1 + $0x48] sm:$0xff]
    %v36 = vld [vmem:[%s1 + $0x50] sm:$0xff]
    %v37 = vld [vmem:[%s1 + $0x58] sm:$0xff]
    %v38 = vld [vmem:[%s1 + $0x60] sm:$0xff]
    %v39 = vld [vmem:[%s1 + $0x68] sm:$0xff]
    %v40 = vld [vmem:[%s1 + $0x70] sm:$0xff]
    %v41 = vld [vmem:[%s1 + $0x78] sm:$0xff]
    %42 = vmatpush.msra.mxu0 %v41
    %43 = vmatpush.msra.mxu0 %v40
    %44 = vmatpush.msra.mxu0 %v39
    %45 = vmatpush.msra.mxu0 %v38
    %46 = vmatpush.msra.mxu0 %v37
    %47 = vmatpush.msra.mxu0 %v36
    %48 = vmatpush.msra.mxu0 %v35
    %49 = vmatpush.msra.mxu0 %v34
    %50 = vmatpush.msra.mxu0 %v33
    %51 = vmatpush.msra.mxu0 %v32
    %52 = vmatpush.msra.mxu0 %v31
    %53 = vmatpush.msra.mxu0 %v30
    %54 = vmatpush.msra.mxu0 %v29
    %55 = vmatpush.msra.mxu0 %v28
    %56 = vmatpush.msra.mxu0 %v27
    %57 = vmatpush.msra.mxu0 %v26
    %58 = vmatmul.f32.gmra.mxu0 %v25
    %v59 = vpop.f32.mrf.mxu0
    %v60 = vadd.f32 0.0, %v59
    %61 = vdwg.mxu0
    %v62 = vadd.f32 %v24, %v60
    %63 = vst [vmem:[#allocation2] sm:$0xff] %v62
    // Predicated region
    $region18: #{dense_pallas.1} parent=1 // pred_check
      _
    $region19: #{dense_pallas.1} parent=1 // pred_check_branch
      %65 = sbr.rel (0) target = $region21
    $region20: #{dense_pallas.1} parent=1 // pred_region
      %67 = vsyncadd [#allocation3], 0
      %s69 = sshll.u32 [#allocation2], 4
      %s70 = int_to_ptr.vmem [resolvable:$true] %s69
      %s71 = sshll.u32 %s3, 4
      %s72 = int_to_ptr.hbm [resolvable:$true] %s71
      %74 = dma.vmem_to_hbm [thread:$0]  %s70, 128, %s72, [#allocation3]
    $region21: #{dense_pallas.1} parent=1 // pred_fallthru
      _
    // Predicated region
    $region22: #{dense_pallas.1} parent=1 // pred_check
      _
    $region23: #{dense_pallas.1} parent=1 // pred_check_branch
      %76 = sbr.rel (0) target = $region25
    $region24: #{dense_pallas.1} parent=1 // pred_region
      %78 = dma.done [#allocation3], 128
    $region25: #{dense_pallas.1} parent=1 // pred_fallthru
      _
    %79 = vsyncpa [#allocation3], 1

</llo_original>
